<compile_context>
chip_gen: v7x
topology: tpu7x:2x2x1
jax: 0.10.0
libtpu: 0.0.40
codegen_flags: <defaults>
</compile_context>

<pallas_src>
import functools

import jax
import jax.numpy as jnp
import numpy as np
from jax.experimental import pallas as pl
from jax.experimental.pallas import tpu as pltpu


def _round_up(x, m):
    return (x + m - 1) // m * m


@functools.lru_cache(maxsize=None)
def _vmem_limit_bytes():
    """Generation-aware scoped-VMEM cap: ~80% of physical per-core VMEM."""
    phys = 0
    try:
        phys = int(getattr(pltpu.get_tpu_info(), "vmem_capacity_bytes", 0))
    except Exception:
        phys = 0
    if phys <= 0:
        kind = ""
        try:
            kind = jax.devices()[0].device_kind.lower()
        except Exception:
            pass
        # v7x has 64 MiB / TensorCore; v5e/v6e have 128 MiB.
        phys = 64 * 1024 * 1024 if ("v7" in kind or "7x" in kind) else 128 * 1024 * 1024
    return int(phys * 0.8)


def _pick_tb(bp0, per_row_bytes, fixed_bytes, cap, block_b):
    """Batch tile from the VMEM budget left after resident buffers."""
    budget_rows = max(8, (cap - fixed_bytes) // max(per_row_bytes, 1))
    tb = int(min(block_b, budget_rows, bp0))
    if tb >= 256:
        tb = (tb // 256) * 256          # MXU-friendly M alignment (2x256x256)
    else:
        tb = max(8, (tb // 8) * 8)
    # Prefer >= 2 grid steps so ("parallel", ...) can shard the batch across
    # TensorCores (v7x megacore) instead of leaving one core idle.
    if bp0 >= 16 and tb >= bp0:
        tb = max(8, _round_up((bp0 + 1) // 2, 8))
    return tb


# ----------------------------------------------------------------------------
# Kernels
# ----------------------------------------------------------------------------
def _advanced_prediction_kernel(a_ref, b_ref, wa_ref, wb_ref, wab_ref,
                                b1_ref, w2_ref, b2_ref, o_ref):
    """Resident-weight fast path: everything for one batch tile in one shot."""
    a = a_ref[...]                       # (TB, H) compute dtype (bf16)
    b = b_ref[...]
    ab = a * b                           # bf16 product == f32 product rounded

    # First GEMM with the concat folded algebraically: 3 MXU calls, f32 acc.
    acc = jnp.dot(a, wa_ref[...], preferred_element_type=jnp.float32)
    acc = acc + jnp.dot(b, wb_ref[...], preferred_element_type=jnp.float32)
    acc = acc + jnp.dot(ab, wab_ref[...], preferred_element_type=jnp.float32)
    acc = acc + b1_ref[...]              # (1, H) f32 bias broadcast

    # TODO(synk): RE2's GeLU is the tanh approximation; switch to
    # approximate=False if the reference model uses nn.GELU's exact erf form.
    h = jax.nn.gelu(acc, approximate=True)

    out = jnp.dot(h.astype(w2_ref.dtype), w2_ref[...],
                  preferred_element_type=jnp.float32)
    o_ref[...] = (out + b2_ref[...]).astype(o_ref.dtype)


def _advanced_prediction_kernel_ktiled(a_ref, b_ref, wa_ref, wb_ref, wab_ref,
                                       b1_ref, w2_ref, b2_ref, o_ref, acc_ref):
    """Large-H fallback: K-tiled first GEMM with f32 VMEM accumulator."""
    k = pl.program_id(1)

    @pl.when(k == 0)
    def _():
        acc_ref[...] = jnp.zeros_like(acc_ref)

    a = a_ref[...]                       # (TB, TK) bf16
    b = b_ref[...]
    ab = a * b
    acc_ref[...] += (
        jnp.dot(a, wa_ref[...], preferred_element_type=jnp.float32)
        + jnp.dot(b, wb_ref[...], preferred_element_type=jnp.float32)
        + jnp.dot(ab, wab_ref[...], preferred_element_type=jnp.float32))

    @pl.when(k == pl.num_programs(1) - 1)
    def _():
        h = jax.nn.gelu(acc_ref[...] + b1_ref[...], approximate=True)
        out = jnp.dot(h.astype(w2_ref.dtype), w2_ref[...],
                      preferred_element_type=jnp.float32)
        o_ref[...] = (out + b2_ref[...]).astype(o_ref.dtype)


# ----------------------------------------------------------------------------
# Wrapper
# ----------------------------------------------------------------------------
@functools.partial(jax.jit,
                   static_argnames=("block_b", "compute_dtype", "force_k_tiling"))
def advanced_prediction(a, b, w1, b1, w2, b2, *, block_b=512,
                        compute_dtype=jnp.bfloat16, force_k_tiling=False):
    """AdvancedPrediction forward.

    a, b : (B, H) float32 activations.
    w1   : (H, 4H) torch nn.Linear layout (out_features, in_features).
    b1   : (H,)
    w2   : (C, H) torch layout.
    b2   : (C,)
    Returns (B, C) float32 logits.
    """
    B, H = a.shape
    C = w2.shape[0]
    assert w1.shape == (H, 4 * H) and w2.shape == (C, H)

    w_bytes = jnp.dtype(compute_dtype).itemsize

    # ---- weight prep (once, outside the kernel) ---------------------------
    w1t = jnp.asarray(w1, jnp.float32).T                       # (4H, H)
    w1a, w1b, w1c, w1d = (w1t[i * H:(i + 1) * H] for i in range(4))
    # a@w1a + b@w1b + (a-b)@w1c + (a*b)@w1d
    #   == a@(w1a+w1c) + b@(w1b-w1c) + (a*b)@w1d   (folded in f32, then cast)
    wa = (w1a + w1c).astype(compute_dtype)                     # (H, H)
    wb = (w1b - w1c).astype(compute_dtype)                     # (H, H)
    wab = w1d.astype(compute_dtype)                            # (H, H)

    # Pad classes to a lane-dense multiple of 128 (unmasked vector stores).
    Cp = max(128, _round_up(C, 128))
    w2t = jnp.zeros((H, Cp), compute_dtype).at[:, :C].set(
        jnp.asarray(w2, jnp.float32).T.astype(compute_dtype))
    b1r = jnp.asarray(b1, jnp.float32).reshape(1, H)
    b2r = jnp.zeros((1, Cp), jnp.float32).at[0, :C].set(
        jnp.asarray(b2, jnp.float32))

    # bf16 activations: halves HBM->VMEM DMA and the activation VMEM footprint.
    a_c = jnp.asarray(a, compute_dtype)
    b_c = jnp.asarray(b, compute_dtype)

    cap = _vmem_limit_bytes()
    headroom = 4 << 20
    resident_w_bytes = (3 * H * H + H * Cp) * w_bytes
    bias_bytes = (H + Cp) * 4
    Bp0 = _round_up(B, 8)

    # K-tiled fallback only pays off (and only tiles cleanly) for 128-aligned H
    # once the resident bf16 weights exceed roughly half of VMEM.
    use_k = (force_k_tiling or resident_w_bytes > cap // 2) and (H % 128 == 0)

    cost = pl.CostEstimate(
        flops=2 * Bp0 * (3 * H * H + H * Cp),
        transcendentals=Bp0 * H,
        bytes_accessed=(2 * Bp0 * H * w_bytes + resident_w_bytes + bias_bytes
                        + Bp0 * Cp * 4))

    if not use_k:
        # -------- resident-weight fast path --------------------------------
        # per-row: double-buffered bf16 a,b tiles + double-buffered f32 out
        # tile + f32 acc / bf16 h compiler temporaries.
        per_row = 2 * (2 * H * w_bytes + Cp * 4) + H * 4 + H * w_bytes
        fixed = resident_w_bytes + bias_bytes + headroom   # single-buffered
        TB = _pick_tb(Bp0, per_row, fixed, cap, block_b)
        Bp = _round_up(Bp0, TB)
        if Bp != B:            # pad fuses with the bf16 cast in one XLA pass
            a_c = jnp.pad(a_c, ((0, Bp - B), (0, 0)))
            b_c = jnp.pad(b_c, ((0, Bp - B), (0, 0)))

        act_spec = pl.BlockSpec((TB, H), lambda i: (i, 0))

        def resident(shape):
            # Constant index_map -> fetched once; single-buffer to reclaim VMEM.
            return pl.BlockSpec(shape, lambda i: (0, 0),
                                pipeline_mode=pl.Buffered(1))

        vmem_limit = int(min(cap, max(32 << 20, fixed + TB * per_row)))

        out = pl.pallas_call(
            _advanced_prediction_kernel,
            out_shape=jax.ShapeDtypeStruct((Bp, Cp), jnp.float32),
            grid=(Bp // TB,),
            in_specs=[act_spec, act_spec,
                      resident((H, H)), resident((H, H)), resident((H, H)),
                      resident((1, H)), resident((H, Cp)), resident((1, Cp))],
            out_specs=pl.BlockSpec((TB, Cp), lambda i: (i, 0)),
            compiler_params=pltpu.CompilerParams(
                dimension_semantics=("parallel",),
                vmem_limit_bytes=vmem_limit),
            cost_estimate=cost,
        )(a_c, b_c, wa, wb, wab, b1r, w2t, b2r)
    else:
        # -------- K-tiled fallback (large H) --------------------------------
        TK = 128
        for cand in (512, 256, 128):
            if H % cand == 0 and 2 * 3 * cand * H * w_bytes <= cap // 2:
                TK = cand
                break
        # per-row: double-buffered bf16 a,b (TB,TK) tiles + double-buffered
        # f32 out tile + f32 (TB,H) accumulator scratch + bf16 h temporary.
        per_row = 2 * (2 * TK * w_bytes + Cp * 4) + H * 4 + H * w_bytes
        fixed = (2 * 3 * TK * H * w_bytes      # double-buffered K weight tiles
                 + H * Cp * w_bytes            # resident W2 (single-buffered)
                 + bias_bytes + headroom)
        TB = _pick_tb(Bp0, per_row, fixed, cap, block_b)
        Bp = _round_up(Bp0, TB)
        if Bp != B:
            a_c = jnp.pad(a_c, ((0, Bp - B), (0, 0)))
            b_c = jnp.pad(b_c, ((0, Bp - B), (0, 0)))

        vmem_limit = int(min(cap, max(32 << 20, fixed + TB * per_row)))

        out = pl.pallas_call(
            _advanced_prediction_kernel_ktiled,
            out_shape=jax.ShapeDtypeStruct((Bp, Cp), jnp.float32),
            grid=(Bp // TB, H // TK),
            in_specs=[
                pl.BlockSpec((TB, TK), lambda i, k: (i, k)),
                pl.BlockSpec((TB, TK), lambda i, k: (i, k)),
                pl.BlockSpec((TK, H), lambda i, k: (k, 0)),
                pl.BlockSpec((TK, H), lambda i, k: (k, 0)),
                pl.BlockSpec((TK, H), lambda i, k: (k, 0)),
                pl.BlockSpec((1, H), lambda i, k: (0, 0),
                             pipeline_mode=pl.Buffered(1)),
                pl.BlockSpec((H, Cp), lambda i, k: (0, 0),
                             pipeline_mode=pl.Buffered(1)),
                pl.BlockSpec((1, Cp), lambda i, k: (0, 0),
                             pipeline_mode=pl.Buffered(1)),
            ],
            out_specs=pl.BlockSpec((TB, Cp), lambda i, k: (i, 0)),
            scratch_shapes=[pltpu.VMEM((TB, H), jnp.float32)],
            compiler_params=pltpu.CompilerParams(
                dimension_semantics=("parallel", "arbitrary"),
                vmem_limit_bytes=vmem_limit),
            cost_estimate=cost,
        )(a_c, b_c, wa, wb, wab, b1r, w2t, b2r)

    return out[:B, :C]


# ----------------------------------------------------------------------------
# Reference + self-test
# ----------------------------------------------------------------------------
def _reference_f32(a, b, w1, b1, w2, b2):
    """Pure-JAX f32 reference of the PyTorch forward (eval mode)."""
    x = jnp.concatenate([a, b, a - b, a * b], axis=-1)
    h = jax.nn.gelu(x @ w1.T + b1, approximate=True)
    return h @ w2.T + b2


def _make_inputs(B, H, C, key):
    ka, kb, kw1, kb1, kw2, kb2 = jax.random.split(key, 6)
    a = jax.random.normal(ka, (B, H), jnp.float32)
    b = jax.random.normal(kb, (B, H), jnp.float32)
    # torch nn.Linear layout: weight (out_features, in_features), bias (out,)
    w1 = jax.random.normal(kw1, (H, 4 * H), jnp.float32) / np.sqrt(4 * H)
    b1 = jax.random.normal(kb1, (H,), jnp.float32) * 0.1
    w2 = jax.random.normal(kw2, (C, H), jnp.float32) / np.sqrt(H)
    b2 = jax.random.normal(kb2, (C,), jnp.float32) * 0.1
    return a, b, w1, b1, w2, b2


if __name__ == "__main__":
    key = jax.random.PRNGKey(0)
    k1, k2 = jax.random.split(key)

    # 1) small shapes (args.hidden_size=32, num_classes=3): resident fast path.
    args1 = _make_inputs(8, 32, 3, k1)
    out1 = jax.block_until_ready(advanced_prediction(*args1))
    ref1 = _reference_f32(*args1)
    np.testing.assert_allclose(np.asarray(out1), np.asarray(ref1),
                               rtol=5e-2, atol=5e-2)

    # 2) exercise the large-H K-tiled fallback path on a still-small shape.
    args2 = _make_inputs(64, 384, 5, k2)
    out2 = jax.block_until_ready(
        advanced_prediction(*args2, force_k_tiling=True))
    ref2 = _reference_f32(*args2)
    np.testing.assert_allclose(np.asarray(out2), np.asarray(ref2),
                               rtol=5e-2, atol=5e-2)

    print("KERNEL_OK")
</pallas_src>

<mosaic_0001>
module attributes {stable_mosaic.version = 11 : i64} {
  func.func @_advanced_prediction_kernel(%arg0: i32, %arg1: memref<8x32xbf16, #tpu.memory_space<vmem>>, %arg2: memref<8x32xbf16, #tpu.memory_space<vmem>>, %arg3: memref<32x32xbf16, #tpu.memory_space<vmem>>, %arg4: memref<32x32xbf16, #tpu.memory_space<vmem>>, %arg5: memref<32x32xbf16, #tpu.memory_space<vmem>>, %arg6: memref<1x32xf32, #tpu.memory_space<vmem>>, %arg7: memref<32x128xbf16, #tpu.memory_space<vmem>>, %arg8: memref<1x128xf32, #tpu.memory_space<vmem>>, %arg9: memref<8x128xf32, #tpu.memory_space<vmem>>) attributes {dimension_semantics = [#tpu.dimension_semantics<parallel>], iteration_bounds = array<i64: 1>, scalar_prefetch = 0 : i64, scratch_operands = 0 : i64, tpu.core_type = #tpu.core_type<tc>, window_params = [{transform_indices = @transform_0, window_bounds = array<i64: 8, 32>}, {transform_indices = @transform_1, window_bounds = array<i64: 8, 32>}, {pipeline_mode = #tpu.pipeline_mode<synchronous>, transform_indices = @transform_2, window_bounds = array<i64: 32, 32>}, {pipeline_mode = #tpu.pipeline_mode<synchronous>, transform_indices = @transform_3, window_bounds = array<i64: 32, 32>}, {pipeline_mode = #tpu.pipeline_mode<synchronous>, transform_indices = @transform_4, window_bounds = array<i64: 32, 32>}, {pipeline_mode = #tpu.pipeline_mode<synchronous>, transform_indices = @transform_5, window_bounds = array<i64: 1, 32>}, {pipeline_mode = #tpu.pipeline_mode<synchronous>, transform_indices = @transform_6, window_bounds = array<i64: 32, 128>}, {pipeline_mode = #tpu.pipeline_mode<synchronous>, transform_indices = @transform_7, window_bounds = array<i64: 1, 128>}, {transform_indices = @transform_8, window_bounds = array<i64: 8, 128>}]} {
    %c0 = arith.constant 0 : index
    %c0_0 = arith.constant 0 : index
    %0 = vector.load %arg1[%c0, %c0_0] : memref<8x32xbf16, #tpu.memory_space<vmem>>, vector<8x32xbf16>
    %c0_1 = arith.constant 0 : index
    %c0_2 = arith.constant 0 : index
    %1 = vector.load %arg2[%c0_1, %c0_2] : memref<8x32xbf16, #tpu.memory_space<vmem>>, vector<8x32xbf16>
    %2 = arith.mulf %0, %1 : vector<8x32xbf16>
    %c0_3 = arith.constant 0 : index
    %c0_4 = arith.constant 0 : index
    %3 = vector.load %arg3[%c0_3, %c0_4] : memref<32x32xbf16, #tpu.memory_space<vmem>>, vector<32x32xbf16>
    %cst = arith.constant dense<0.000000e+00> : vector<8x32xf32>
    %4 = tpu.matmul %0, %3, %cst {dimension_numbers = #tpu.dot_dimension_numbers<[1], [0], [0], [1], [0, 0, 1, 1], [], []>} : vector<8x32xbf16>, vector<32x32xbf16>, vector<8x32xf32> -> vector<8x32xf32>
    %c0_5 = arith.constant 0 : index
    %c0_6 = arith.constant 0 : index
    %5 = vector.load %arg4[%c0_5, %c0_6] : memref<32x32xbf16, #tpu.memory_space<vmem>>, vector<32x32xbf16>
    %cst_7 = arith.constant dense<0.000000e+00> : vector<8x32xf32>
    %6 = tpu.matmul %1, %5, %cst_7 {dimension_numbers = #tpu.dot_dimension_numbers<[1], [0], [0], [1], [0, 0, 1, 1], [], []>} : vector<8x32xbf16>, vector<32x32xbf16>, vector<8x32xf32> -> vector<8x32xf32>
    %7 = arith.addf %4, %6 : vector<8x32xf32>
    %c0_8 = arith.constant 0 : index
    %c0_9 = arith.constant 0 : index
    %8 = vector.load %arg5[%c0_8, %c0_9] : memref<32x32xbf16, #tpu.memory_space<vmem>>, vector<32x32xbf16>
    %cst_10 = arith.constant dense<0.000000e+00> : vector<8x32xf32>
    %9 = tpu.matmul %2, %8, %cst_10 {dimension_numbers = #tpu.dot_dimension_numbers<[1], [0], [0], [1], [0, 0, 1, 1], [], []>} : vector<8x32xbf16>, vector<32x32xbf16>, vector<8x32xf32> -> vector<8x32xf32>
    %10 = arith.addf %7, %9 : vector<8x32xf32>
    %c0_11 = arith.constant 0 : index
    %c0_12 = arith.constant 0 : index
    %11 = vector.load %arg6[%c0_11, %c0_12] : memref<1x32xf32, #tpu.memory_space<vmem>>, vector<1x32xf32>
    %12 = vector.broadcast %11 : vector<1x32xf32> to vector<8x32xf32>
    %13 = arith.addf %10, %12 : vector<8x32xf32>
    %14 = arith.mulf %13, %13 : vector<8x32xf32>
    %15 = arith.mulf %13, %14 : vector<8x32xf32>
    %cst_13 = arith.constant 4.471500e-02 : f32
    %16 = vector.broadcast %cst_13 : f32 to vector<8x32xf32>
    %17 = arith.mulf %16, %15 : vector<8x32xf32>
    %18 = arith.addf %13, %17 : vector<8x32xf32>
    %cst_14 = arith.constant 0.797884583 : f32
    %19 = vector.broadcast %cst_14 : f32 to vector<8x32xf32>
    %20 = arith.mulf %19, %18 : vector<8x32xf32>
    %21 = math.tanh %20 : vector<8x32xf32>
    %cst_15 = arith.constant 1.000000e+00 : f32
    %22 = vector.broadcast %cst_15 : f32 to vector<8x32xf32>
    %23 = arith.addf %22, %21 : vector<8x32xf32>
    %cst_16 = arith.constant 5.000000e-01 : f32
    %24 = vector.broadcast %cst_16 : f32 to vector<8x32xf32>
    %25 = arith.mulf %24, %23 : vector<8x32xf32>
    %26 = arith.mulf %13, %25 : vector<8x32xf32>
    %27 = arith.truncf %26 : vector<8x32xf32> to vector<8x32xbf16>
    %c0_17 = arith.constant 0 : index
    %c0_18 = arith.constant 0 : index
    %28 = vector.load %arg7[%c0_17, %c0_18] : memref<32x128xbf16, #tpu.memory_space<vmem>>, vector<32x128xbf16>
    %cst_19 = arith.constant dense<0.000000e+00> : vector<8x128xf32>
    %29 = tpu.matmul %27, %28, %cst_19 {dimension_numbers = #tpu.dot_dimension_numbers<[1], [0], [0], [1], [0, 0, 1, 1], [], []>} : vector<8x32xbf16>, vector<32x128xbf16>, vector<8x128xf32> -> vector<8x128xf32>
    %c0_20 = arith.constant 0 : index
    %c0_21 = arith.constant 0 : index
    %30 = vector.load %arg8[%c0_20, %c0_21] : memref<1x128xf32, #tpu.memory_space<vmem>>, vector<1x128xf32>
    %31 = vector.broadcast %30 : vector<1x128xf32> to vector<8x128xf32>
    %32 = arith.addf %29, %31 : vector<8x128xf32>
    %c0_22 = arith.constant 0 : index
    %c0_23 = arith.constant 0 : index
    %33 = vector.load %arg9[%c0_22, %c0_23] : memref<8x128xf32, #tpu.memory_space<vmem>>, vector<8x128xf32>
    tpu.vector_store %arg9[%c0_22, %c0_23], %32 {strides = array<i32>} : memref<8x128xf32, #tpu.memory_space<vmem>>, vector<8x128xf32>,
    return
  }
  func.func @transform_0(%arg0: i32) -> (i32, i32) {
    %c0_i32 = arith.constant 0 : i32
    %c0_i32_0 = arith.constant 0 : i32
    return %arg0, %c0_i32 : i32, i32
  }
  func.func @transform_1(%arg0: i32) -> (i32, i32) {
    %c0_i32 = arith.constant 0 : i32
    %c0_i32_0 = arith.constant 0 : i32
    return %arg0, %c0_i32 : i32, i32
  }
  func.func @transform_2(%arg0: i32) -> (i32, i32) {
    %c0_i32 = arith.constant 0 : i32
    %c0_i32_0 = arith.constant 0 : i32
    %c0_i32_1 = arith.constant 0 : i32
    return %c0_i32, %c0_i32_0 : i32, i32
  }
  func.func @transform_3(%arg0: i32) -> (i32, i32) {
    %c0_i32 = arith.constant 0 : i32
    %c0_i32_0 = arith.constant 0 : i32
    %c0_i32_1 = arith.constant 0 : i32
    return %c0_i32, %c0_i32_0 : i32, i32
  }
  func.func @transform_4(%arg0: i32) -> (i32, i32) {
    %c0_i32 = arith.constant 0 : i32
    %c0_i32_0 = arith.constant 0 : i32
    %c0_i32_1 = arith.constant 0 : i32
    return %c0_i32, %c0_i32_0 : i32, i32
  }
  func.func @transform_5(%arg0: i32) -> (i32, i32) {
    %c0_i32 = arith.constant 0 : i32
    %c0_i32_0 = arith.constant 0 : i32
    %c0_i32_1 = arith.constant 0 : i32
    return %c0_i32, %c0_i32_0 : i32, i32
  }
  func.func @transform_6(%arg0: i32) -> (i32, i32) {
    %c0_i32 = arith.constant 0 : i32
    %c0_i32_0 = arith.constant 0 : i32
    %c0_i32_1 = arith.constant 0 : i32
    return %c0_i32, %c0_i32_0 : i32, i32
  }
  func.func @transform_7(%arg0: i32) -> (i32, i32) {
    %c0_i32 = arith.constant 0 : i32
    %c0_i32_0 = arith.constant 0 : i32
    %c0_i32_1 = arith.constant 0 : i32
    return %c0_i32, %c0_i32_0 : i32, i32
  }
  func.func @transform_8(%arg0: i32) -> (i32, i32) {
    %c0_i32 = arith.constant 0 : i32
    %c0_i32_0 = arith.constant 0 : i32
    return %arg0, %c0_i32 : i32, i32
  }
}

</mosaic_0001>

<llo_original>
// kernel: advanced_prediction.1
$region0: #{advanced_prediction.1}
  #allocation0 [shape = 'u32[]', space=smem, size = 0x4, offset = 0x4, fixed_abs, tag = 'smem constant byte address 0x4 - core index']
  #allocation1 [shape = 'u32[144,128]{1,0:T(1,128)}', space=vmem, size = 0x12000, scoped, tag = 'internal scratch']
  %s0 = inlined_call_operand.vmem [shape: bf16[8,32], index: 0, kind: input, shape index: {}]
  %s1 = inlined_call_operand.vmem [shape: bf16[8,32], index: 1, kind: input, shape index: {}]
  %s2 = inlined_call_operand.vmem [shape: bf16[32,32], index: 2, kind: input, shape index: {}]
  %s3 = inlined_call_operand.vmem [shape: bf16[32,32], index: 3, kind: input, shape index: {}]
  %s4 = inlined_call_operand.vmem [shape: bf16[32,32], index: 4, kind: input, shape index: {}]
  %s5 = inlined_call_operand.vmem [shape: f32[1,32], index: 5, kind: input, shape index: {}]
  %s6 = inlined_call_operand.vmem [shape: bf16[32,128], index: 6, kind: input, shape index: {}]
  %s7 = inlined_call_operand.vmem [shape: f32[1,128], index: 7, kind: input, shape index: {}]
  %s8 = inlined_call_operand.vmem [shape: f32[8,128], index: 8, kind: output, shape index: {}]
  %s9 = sld [smem:[#allocation0]]
  $region42: #{advanced_prediction.1} parent=0
    _
  %s11 = ssub.s32 1, %s9
  %s12 = scalar_select 0, %s11, %s9
  // Predicated region
  $region2: #{advanced_prediction.1} parent=0 // pred_check
    _
  $region3: #{advanced_prediction.1} parent=0 // pred_check_branch
    %14 = sbr.rel (0) target = $region5
  $region4: #{advanced_prediction.1} parent=0 // pred_region
    _
  $region5: #{advanced_prediction.1} parent=0 // pred_fallthru
    _
  // Predicated region
  $region6: #{advanced_prediction.1} parent=0 // pred_check
    _
  $region7: #{advanced_prediction.1} parent=0 // pred_check_branch
    %16 = sbr.rel (0) target = $region9
  $region8: #{advanced_prediction.1} parent=0 // pred_region
    _
  $region9: #{advanced_prediction.1} parent=0 // pred_fallthru
    _
  // Predicated region
  $region10: #{advanced_prediction.1} parent=0 // pred_check
    _
  $region11: #{advanced_prediction.1} parent=0 // pred_check_branch
    %18 = sbr.rel (0) target = $region13
  $region12: #{advanced_prediction.1} parent=0 // pred_region
    _
  $region13: #{advanced_prediction.1} parent=0 // pred_fallthru
    _
  // Predicated region
  $region14: #{advanced_prediction.1} parent=0 // pred_check
    _
  $region15: #{advanced_prediction.1} parent=0 // pred_check_branch
    %20 = sbr.rel (0) target = $region17
  $region16: #{advanced_prediction.1} parent=0 // pred_region
    _
  $region17: #{advanced_prediction.1} parent=0 // pred_fallthru
    _
  // Predicated region
  $region18: #{advanced_prediction.1} parent=0 // pred_check
    _
  $region19: #{advanced_prediction.1} parent=0 // pred_check_branch
    %22 = sbr.rel (0) target = $region21
  $region20: #{advanced_prediction.1} parent=0 // pred_region
    _
  $region21: #{advanced_prediction.1} parent=0 // pred_fallthru
    _
  // Predicated region
  $region22: #{advanced_prediction.1} parent=0 // pred_check
    _
  $region23: #{advanced_prediction.1} parent=0 // pred_check_branch
    %24 = sbr.rel (0) target = $region25
  $region24: #{advanced_prediction.1} parent=0 // pred_region
    _
  $region25: #{advanced_prediction.1} parent=0 // pred_fallthru
    _
  // Predicated region
  $region26: #{advanced_prediction.1} parent=0 // pred_check
    _
  $region27: #{advanced_prediction.1} parent=0 // pred_check_branch
    %26 = sbr.rel (0) target = $region29
  $region28: #{advanced_prediction.1} parent=0 // pred_region
    _
  $region29: #{advanced_prediction.1} parent=0 // pred_fallthru
    _
  // Predicated region
  $region30: #{advanced_prediction.1} parent=0 // pred_check
    _
  $region31: #{advanced_prediction.1} parent=0 // pred_check_branch
    %28 = sbr.rel (0) target = $region33
  $region32: #{advanced_prediction.1} parent=0 // pred_region
    _
  $region33: #{advanced_prediction.1} parent=0 // pred_fallthru
    _
  %v30 = vld [vmem:[%s0] sm:$0xf]
  %v31 = vld [vmem:[%s1] sm:$0xf]
  %v32 = vmul.bf16 %v30, %v31
  %v33 = vld [vmem:[%s2] sm:$0xf]
  %v34 = vld [vmem:[%s2 + $0x4] sm:$0xf]
  %v35 = vld [vmem:[%s2 + $0x8] sm:$0xf]
  %v36 = vld [vmem:[%s2 + $0xc] sm:$0xf]
  %v37 = vld [vmem:[%s3] sm:$0xf]
  %v38 = vld [vmem:[%s3 + $0x4] sm:$0xf]
  %v39 = vld [vmem:[%s3 + $0x8] sm:$0xf]
  %v40 = vld [vmem:[%s3 + $0xc] sm:$0xf]
  %v45 = vunpack.c.l.b16 %v37
  %v46 = vunpack.c.l.b16 %v38
  %v47 = vunpack.c.l.b16 %v39
  %v48 = vunpack.c.l.b16 %v40
  %v49 = vpack.c.b16 %v46, %v45
  %v50 = vpack.c.b16 %v48, %v47
  %vm53 = vcmask 261120
  %v55 = vsel %vm53, %v31, 0
  %57 = vmatprep.subr.bf16.mxu0 0
  %58 = vmatpush1.bf16.msra.mxu0 %v49
  %59 = vmatprep.subr.bf16.mxu0 0
  %60 = vmatpush1.bf16.msra.mxu0 %v50
  %61 = vmatprep.subr.bf16.mxu0 0
  %62 = vmatpush1.bf16.msra.mxu0 0
  %63 = vmatprep.subr.bf16.mxu0 0
  %64 = vmatpush1.bf16.msra.mxu0 0
  %65 = vmatprep.subr.bf16.mxu0 0
  %66 = vmatpush1.bf16.msra.mxu0 0
  %67 = vmatprep.subr.bf16.mxu0 0
  %68 = vmatpush1.bf16.msra.mxu0 0
  %69 = vmatprep.subr.bf16.mxu0 0
  %70 = vmatpush1.bf16.msra.mxu0 0
  %71 = vmatprep.subr.bf16.mxu0 0
  %72 = vmatpush1.bf16.msra.mxu0 0
  %73 = vmatprep.subr.bf16.mxu0 0
  %74 = vmatpush1.bf16.msra.mxu0 0
  %75 = vmatprep.subr.bf16.mxu0 0
  %76 = vmatpush1.bf16.msra.mxu0 0
  %77 = vmatprep.subr.bf16.mxu0 0
  %78 = vmatpush1.bf16.msra.mxu0 0
  %79 = vmatprep.subr.bf16.mxu0 0
  %80 = vmatpush1.bf16.msra.mxu0 0
  %81 = vmatprep.subr.bf16.mxu0 0
  %82 = vmatpush1.bf16.msra.mxu0 0
  %83 = vmatprep.subr.bf16.mxu0 0
  %84 = vmatpush1.bf16.msra.mxu0 0
  %85 = vmatprep.subr.bf16.mxu0 0
  %86 = vmatpush1.bf16.msra.mxu0 0
  %87 = vmatprep.subr.bf16.mxu0 0
  %88 = vmatpush1.bf16.msra.mxu0 0
  %89 = vmatprep.mubr.bf16.mxu0 0
  %90 = vmatmul.mubr.bf16.gmra.mrb[0].mxu0 %v55
  %v91 = vpop.f32.mrb[0].mxu0
  %v92 = vadd.f32 0.0, %v91
  %v93 = vpop.f32.mrb[0].mxu0
  %v94 = vpop.f32.mrb[0].mxu0
  %v95 = vpop.f32.mrb[0].mxu0
  %96 = vdwg.mxu0
  %v101 = vunpack.c.l.b16 %v33
  %v102 = vunpack.c.l.b16 %v34
  %v103 = vunpack.c.l.b16 %v35
  %v104 = vunpack.c.l.b16 %v36
  %v105 = vpack.c.b16 %v102, %v101
  %v106 = vpack.c.b16 %v104, %v103
  %v110 = vsel %vm53, %v30, 0
  %112 = vmatprep.subr.bf16.mxu0 0
  %113 = vmatpush1.bf16.msra.mxu0 %v105
  %114 = vmatprep.subr.bf16.mxu0 0
  %115 = vmatpush1.bf16.msra.mxu0 %v106
  %116 = vmatprep.subr.bf16.mxu0 0
  %117 = vmatpush1.bf16.msra.mxu0 0
  %118 = vmatprep.subr.bf16.mxu0 0
  %119 = vmatpush1.bf16.msra.mxu0 0
  %120 = vmatprep.subr.bf16.mxu0 0
  %121 = vmatpush1.bf16.msra.mxu0 0
  %122 = vmatprep.subr.bf16.mxu0 0
  %123 = vmatpush1.bf16.msra.mxu0 0
  %124 = vmatprep.subr.bf16.mxu0 0
  %125 = vmatpush1.bf16.msra.mxu0 0
  %126 = vmatprep.subr.bf16.mxu0 0
  %127 = vmatpush1.bf16.msra.mxu0 0
  %128 = vmatprep.subr.bf16.mxu0 0
  %129 = vmatpush1.bf16.msra.mxu0 0
  %130 = vmatprep.subr.bf16.mxu0 0
  %131 = vmatpush1.bf16.msra.mxu0 0
  %132 = vmatprep.subr.bf16.mxu0 0
  %133 = vmatpush1.bf16.msra.mxu0 0
  %134 = vmatprep.subr.bf16.mxu0 0
  %135 = vmatpush1.bf16.msra.mxu0 0
  %136 = vmatprep.subr.bf16.mxu0 0
  %137 = vmatpush1.bf16.msra.mxu0 0
  %138 = vmatprep.subr.bf16.mxu0 0
  %139 = vmatpush1.bf16.msra.mxu0 0
  %140 = vmatprep.subr.bf16.mxu0 0
  %141 = vmatpush1.bf16.msra.mxu0 0
  %142 = vmatprep.subr.bf16.mxu0 0
  %143 = vmatpush1.bf16.msra.mxu0 0
  %144 = vmatprep.mubr.bf16.mxu0 0
  %145 = vmatmul.mubr.bf16.gmra.mrb[0].mxu0 %v110
  %v146 = vpop.f32.mrb[0].mxu0
  %v147 = vadd.f32 %v92, %v146
  %v148 = vpop.f32.mrb[0].mxu0
  %v149 = vpop.f32.mrb[0].mxu0
  %v150 = vpop.f32.mrb[0].mxu0
  %151 = vdwg.mxu0
  %v152 = vld [vmem:[%s4] sm:$0xf]
  %v153 = vld [vmem:[%s4 + $0x4] sm:$0xf]
  %v154 = vld [vmem:[%s4 + $0x8] sm:$0xf]
  %v155 = vld [vmem:[%s4 + $0xc] sm:$0xf]
  %v160 = vunpack.c.l.b16 %v152
  %v161 = vunpack.c.l.b16 %v153
  %v162 = vunpack.c.l.b16 %v154
  %v163 = vunpack.c.l.b16 %v155
  %v164 = vpack.c.b16 %v161, %v160
  %v165 = vpack.c.b16 %v163, %v162
  %v169 = vsel %vm53, %v32, 0
  %171 = vmatprep.subr.bf16.mxu0 0
  %172 = vmatpush1.bf16.msra.mxu0 %v164
  %173 = vmatprep.subr.bf16.mxu0 0
  %174 = vmatpush1.bf16.msra.mxu0 %v165
  %175 = vmatprep.subr.bf16.mxu0 0
  %176 = vmatpush1.bf16.msra.mxu0 0
  %177 = vmatprep.subr.bf16.mxu0 0
  %178 = vmatpush1.bf16.msra.mxu0 0
  %179 = vmatprep.subr.bf16.mxu0 0
  %180 = vmatpush1.bf16.msra.mxu0 0
  %181 = vmatprep.subr.bf16.mxu0 0
  %182 = vmatpush1.bf16.msra.mxu0 0
  %183 = vmatprep.subr.bf16.mxu0 0
  %184 = vmatpush1.bf16.msra.mxu0 0
  %185 = vmatprep.subr.bf16.mxu0 0
  %186 = vmatpush1.bf16.msra.mxu0 0
  %187 = vmatprep.subr.bf16.mxu0 0
  %188 = vmatpush1.bf16.msra.mxu0 0
  %189 = vmatprep.subr.bf16.mxu0 0
  %190 = vmatpush1.bf16.msra.mxu0 0
  %191 = vmatprep.subr.bf16.mxu0 0
  %192 = vmatpush1.bf16.msra.mxu0 0
  %193 = vmatprep.subr.bf16.mxu0 0
  %194 = vmatpush1.bf16.msra.mxu0 0
  %195 = vmatprep.subr.bf16.mxu0 0
  %196 = vmatpush1.bf16.msra.mxu0 0
  %197 = vmatprep.subr.bf16.mxu0 0
  %198 = vmatpush1.bf16.msra.mxu0 0
  %199 = vmatprep.subr.bf16.mxu0 0
  %200 = vmatpush1.bf16.msra.mxu0 0
  %201 = vmatprep.subr.bf16.mxu0 0
  %202 = vmatpush1.bf16.msra.mxu0 0
  %203 = vmatprep.mubr.bf16.mxu0 0
  %204 = vmatmul.mubr.bf16.gmra.mrb[0].mxu0 %v169
  %v205 = vpop.f32.mrb[0].mxu0
  %v206 = vadd.f32 0.0, %v205
  %v207 = vpop.f32.mrb[0].mxu0
  %v208 = vpop.f32.mrb[0].mxu0
  %v209 = vpop.f32.mrb[0].mxu0
  %210 = vdwg.mxu0
  %v211 = vadd.f32 %v147, %v206
  %v212 = vld [vmem:[%s5] sm:$0x1]
  %v214 = vlaneseq
  %v215 = vshrl.u32 %v214, 7
  %v216 = vsub.s32 0, %v215
  %v217 = vrot.slane %v212, %v216
  %v219 = vadd.f32 %v211, %v217
  %v220 = vmul.f32 %v219, %v219
  %v221 = vmul.f32 %v219, %v220
  %v222 = vmul.f32 %v221, 0.044715
  %v223 = vadd.f32 %v219, %v222
  %v224 = vmul.f32 %v223, 0.7978846
  %v225 = vtanh.pop %v224
  %v226 = vadd.f32 %v225, 1.0
  %v227 = vmul.f32 %v226, 0.5
  %v228 = vmul.f32 %v219, %v227
  %v229 = vpack.c.bf16 %v228, %v228
  %v230 = vld [vmem:[%s6] sm:$0xf]
  %v231 = vld [vmem:[%s6 + $0x4] sm:$0xf]
  %v232 = vld [vmem:[%s6 + $0x8] sm:$0xf]
  %v233 = vld [vmem:[%s6 + $0xc] sm:$0xf]
  %v234 = vld [vmem:[%s7] sm:$0x1]
  %v236 = vlaneseq
  %v237 = vshrl.u32 %v236, 7
  %v238 = vsub.s32 0, %v237
  %v239 = vrot.slane %v234, %v238
  %v245 = vunpack.c.l.b16 %v230
  %v246 = vunpack.c.l.b16 %v231
  %v247 = vunpack.c.l.b16 %v232
  %v248 = vunpack.c.l.b16 %v233
  %v249 = vpack.c.b16 %v246, %v245
  %v250 = vpack.c.b16 %v248, %v247
  %v254 = vsel %vm53, %v229, 0
  %256 = vmatprep.subr.bf16.mxu0 0
  %257 = vmatpush1.bf16.msra.mxu0 %v249
  %258 = vmatprep.subr.bf16.mxu0 0
  %259 = vmatpush1.bf16.msra.mxu0 %v250
  %260 = vmatprep.subr.bf16.mxu0 0
  %261 = vmatpush1.bf16.msra.mxu0 0
  %262 = vmatprep.subr.bf16.mxu0 0
  %263 = vmatpush1.bf16.msra.mxu0 0
  %264 = vmatprep.subr.bf16.mxu0 0
  %265 = vmatpush1.bf16.msra.mxu0 0
  %266 = vmatprep.subr.bf16.mxu0 0
  %267 = vmatpush1.bf16.msra.mxu0 0
  %268 = vmatprep.subr.bf16.mxu0 0
  %269 = vmatpush1.bf16.msra.mxu0 0
  %270 = vmatprep.subr.bf16.mxu0 0
  %271 = vmatpush1.bf16.msra.mxu0 0
  %272 = vmatprep.subr.bf16.mxu0 0
  %273 = vmatpush1.bf16.msra.mxu0 0
  %274 = vmatprep.subr.bf16.mxu0 0
  %275 = vmatpush1.bf16.msra.mxu0 0
  %276 = vmatprep.subr.bf16.mxu0 0
  %277 = vmatpush1.bf16.msra.mxu0 0
  %278 = vmatprep.subr.bf16.mxu0 0
  %279 = vmatpush1.bf16.msra.mxu0 0
  %280 = vmatprep.subr.bf16.mxu0 0
  %281 = vmatpush1.bf16.msra.mxu0 0
  %282 = vmatprep.subr.bf16.mxu0 0
  %283 = vmatpush1.bf16.msra.mxu0 0
  %284 = vmatprep.subr.bf16.mxu0 0
  %285 = vmatpush1.bf16.msra.mxu0 0
  %286 = vmatprep.subr.bf16.mxu0 0
  %287 = vmatpush1.bf16.msra.mxu0 0
  %288 = vmatprep.mubr.bf16.mxu0 0
  %289 = vmatmul.mubr.bf16.gmra.mrb[0].mxu0 %v254
  %v290 = vpop.f32.mrb[0].mxu0
  %v291 = vadd.f32 %v239, %v290
  %v292 = vpop.f32.mrb[0].mxu0
  %v293 = vpop.f32.mrb[0].mxu0
  %v294 = vpop.f32.mrb[0].mxu0
  %295 = vdwg.mxu0
  %296 = vst [vmem:[%s8] sm:$0xff] %v291
  // Predicated region
  $region34: #{advanced_prediction.1} parent=0 // pred_check
    _
  $region35: #{advanced_prediction.1} parent=0 // pred_check_branch
    %298 = sbr.rel (0) target = $region37
  $region36: #{advanced_prediction.1} parent=0 // pred_region
    _
  $region37: #{advanced_prediction.1} parent=0 // pred_fallthru
    _
  // Predicated region
  $region38: #{advanced_prediction.1} parent=0 // pred_check
    _
  $region39: #{advanced_prediction.1} parent=0 // pred_check_branch
    %300 = sbr.rel (0) target = $region41
  $region40: #{advanced_prediction.1} parent=0 // pred_region
    _
  $region41: #{advanced_prediction.1} parent=0 // pred_fallthru
    _

</llo_original>
